<compile_context>
chip_gen: v5e
topology: v5e:2x2
jax: 0.10.0
libtpu: 0.0.40
codegen_flags: <defaults>
</compile_context>

<pallas_src>
import functools

import jax
import jax.numpy as jnp
from jax.experimental import pallas as pl
from jax.experimental.pallas import tpu as pltpu

MIN_NORM = 1e-15
PROJ_EPS_F32 = 4e-3          # PoincareBall.eps[torch.float32]
ARTANH_CLAMP = 1e-15


def hypact_kernel(x_ref, o_ref, *, c_in: float, c_out: float):
    x = x_ref[...].astype(jnp.float32)

    sqrt_cin = jnp.float32(c_in) ** 0.5
    sqrt_cout = jnp.float32(c_out) ** 0.5

    # ---- logmap0(x, c_in): per-row scale s_log (>= 0) ----
    x_norm = jnp.maximum(jnp.sqrt(jnp.sum(x * x, axis=-1, keepdims=True)), MIN_NORM)
    z = jnp.minimum(sqrt_cin * x_norm, 1.0 - ARTANH_CLAMP)   # lower clip dead: z >= 0
    artanh_z = 0.5 * (jnp.log1p(z) - jnp.log1p(-z))
    s_log = artanh_z / (sqrt_cin * x_norm)

    # ---- act = ReLU, commuted with the nonnegative scale: relu(s*x) = s*relu(x) ----
    # TODO(synk): `act` is a constructor arg in the PyTorch module; ReLU assumed here.
    r = jnp.maximum(x, 0.0)
    r_norm = jnp.sqrt(jnp.sum(r * r, axis=-1, keepdims=True))
    u_norm = jnp.maximum(s_log * r_norm, MIN_NORM)            # == clamp(||relu(logmap0(x))||)

    # ---- proj_tan0 is identity; expmap0(u, c_out) per-row scale ----
    t = jnp.tanh(sqrt_cout * u_norm)
    s_exp = t / (sqrt_cout * u_norm)

    # ---- proj(g, c_out): ||g|| = tanh(sqrt_cout*u_norm)/sqrt_cout exactly ----
    g_norm = t / sqrt_cout
    maxnorm = (1.0 - PROJ_EPS_F32) / sqrt_cout
    s_proj = jnp.where(g_norm > maxnorm, maxnorm / g_norm, 1.0)

    # single full-tile multiply with the fused per-row scalar
    o_ref[...] = (r * (s_log * s_exp * s_proj)).astype(o_ref.dtype)


def hyp_act(x, *, c_in: float, c_out: float, max_block_bytes: int = 2 << 20):
    """x: (N, D). Returns HypAct(x) with PoincareBall manifold + ReLU activation."""
    n, d = x.shape

    # Lane-dense feature axis: pad D to a multiple of 128 (zeros are exact no-ops
    # for every norm / scale / ReLU in this kernel).
    d_pad = pl.cdiv(d, 128) * 128

    # Rows per block: largest multiple of 8 within the VMEM budget, clamped to N.
    bytes_per_row = d_pad * 4                      # f32 compute
    tile_rows = max(8, (max_block_bytes // bytes_per_row) // 8 * 8)
    tile_rows = min(tile_rows, pl.cdiv(n, 8) * 8)
    # Keep at least 2 grid steps when possible so both v7x TensorCores get work.
    if pl.cdiv(n, tile_rows) < 2 and tile_rows > 8:
        tile_rows = max(8, pl.cdiv(tile_rows // 2, 8) * 8)

    n_pad = pl.cdiv(n, tile_rows) * tile_rows
    xp = x if (n_pad == n and d_pad == d) else jnp.pad(
        x, ((0, n_pad - n), (0, d_pad - d)))

    kernel = functools.partial(hypact_kernel, c_in=float(c_in), c_out=float(c_out))
    out = pl.pallas_call(
        kernel,
        out_shape=jax.ShapeDtypeStruct((n_pad, d_pad), x.dtype),
        grid_spec=pltpu.PrefetchScalarGridSpec(
            num_scalar_prefetch=0,
            grid=(n_pad // tile_rows,),
            in_specs=[pl.BlockSpec((tile_rows, d_pad), lambda i: (i, 0))],
            out_specs=pl.BlockSpec((tile_rows, d_pad), lambda i: (i, 0)),
        ),
        compiler_params=pltpu.CompilerParams(
            dimension_semantics=("parallel",)),
    )(xp)
    return out[:n, :d]


def _reference(x, c_in, c_out):
    # Pure-JAX, literal (unfused) reference of the same manifold math.
    sqrt_cin = jnp.sqrt(jnp.float32(c_in))
    sqrt_cout = jnp.sqrt(jnp.float32(c_out))
    xn = jnp.maximum(jnp.linalg.norm(x, axis=-1, keepdims=True), MIN_NORM)
    z = jnp.clip(sqrt_cin * xn, -1.0 + ARTANH_CLAMP, 1.0 - ARTANH_CLAMP)
    artanh_z = 0.5 * (jnp.log1p(z) - jnp.log1p(-z))
    u = (artanh_z / (sqrt_cin * xn)) * x
    u = jnp.maximum(u, 0.0)                                    # ReLU
    un = jnp.maximum(jnp.linalg.norm(u, axis=-1, keepdims=True), MIN_NORM)
    g = (jnp.tanh(sqrt_cout * un) / (sqrt_cout * un)) * u
    gn = jnp.maximum(jnp.linalg.norm(g, axis=-1, keepdims=True), MIN_NORM)
    maxnorm = (1.0 - PROJ_EPS_F32) / sqrt_cout
    return jnp.where(gn > maxnorm, g / gn * maxnorm, g)


if __name__ == "__main__":
    key = jax.random.PRNGKey(0)
    N, D = 64, 32                 # small node-feature matrix
    c_in, c_out = 1.0, 0.5

    # Construct VALID points strictly inside the Poincare ball of curvature c_in
    # (row norms in [0.035, 0.7] / sqrt(c_in)), as HypAct receives in practice.
    k1, k2 = jax.random.split(key)
    raw = jax.random.normal(k1, (N, D), dtype=jnp.float32)
    raw_norm = jnp.linalg.norm(raw, axis=-1, keepdims=True)
    radii = (0.7 / jnp.sqrt(jnp.float32(c_in))) * jax.random.uniform(
        k2, (N, 1), minval=0.05, maxval=1.0)
    x = raw / raw_norm * radii

    out = jax.block_until_ready(hyp_act(x, c_in=c_in, c_out=c_out))
    ref = _reference(x, c_in, c_out)

    assert out.shape == (N, D) and out.dtype == jnp.float32
    assert jnp.allclose(out, ref, atol=1e-5, rtol=1e-4), float(
        jnp.max(jnp.abs(out - ref)))

    print("KERNEL_OK")
</pallas_src>

<mosaic_0001>
module attributes {stable_mosaic.version = 11 : i64} {
  func.func @hypact_kernel(%arg0: i32, %arg1: memref<32x128xf32, #tpu.memory_space<vmem>>, %arg2: memref<32x128xf32, #tpu.memory_space<vmem>>) attributes {dimension_semantics = [#tpu.dimension_semantics<parallel>], iteration_bounds = array<i64: 2>, scalar_prefetch = 0 : i64, scratch_operands = 0 : i64, tpu.core_type = #tpu.core_type<tc>, window_params = [{transform_indices = @transform_0, window_bounds = array<i64: 32, 128>}, {transform_indices = @transform_1, window_bounds = array<i64: 32, 128>}]} {
    %c0 = arith.constant 0 : index
    %c0_0 = arith.constant 0 : index
    %0 = vector.load %arg1[%c0, %c0_0] : memref<32x128xf32, #tpu.memory_space<vmem>>, vector<32x128xf32>
    %cst = arith.constant 1.000000e+00 : f32
    %cst_1 = arith.constant 5.000000e-01 : f32
    %1 = math.powf %cst, %cst_1 : f32
    %cst_2 = arith.constant 5.000000e-01 : f32
    %cst_3 = arith.constant 5.000000e-01 : f32
    %2 = math.powf %cst_2, %cst_3 : f32
    %3 = arith.mulf %0, %0 : vector<32x128xf32>
    %cst_4 = arith.constant dense<0.000000e+00> : vector<32xf32>
    %4 = vector.multi_reduction <add>, %3, %cst_4 [1] : vector<32x128xf32> to vector<32xf32>
    %5 = vector.shape_cast %4 : vector<32xf32> to vector<32x1xf32>
    %6 = math.sqrt %5 : vector<32x1xf32>
    %cst_5 = arith.constant 1.000000e-15 : f32
    %7 = vector.broadcast %cst_5 : f32 to vector<32x1xf32>
    %8 = arith.maximumf %6, %7 : vector<32x1xf32>
    %9 = vector.broadcast %1 : f32 to vector<32x1xf32>
    %10 = arith.mulf %9, %8 : vector<32x1xf32>
    %cst_6 = arith.constant 1.000000e+00 : f32
    %11 = vector.broadcast %cst_6 : f32 to vector<32x1xf32>
    %12 = arith.minimumf %10, %11 : vector<32x1xf32>
    %13 = math.log1p %12 : vector<32x1xf32>
    %cst_7 = arith.constant 0.000000e+00 : f32
    %14 = vector.broadcast %cst_7 : f32 to vector<32x1xf32>
    %15 = arith.subf %14, %12 : vector<32x1xf32>
    %16 = math.log1p %15 : vector<32x1xf32>
    %17 = arith.subf %13, %16 : vector<32x1xf32>
    %cst_8 = arith.constant 5.000000e-01 : f32
    %18 = vector.broadcast %cst_8 : f32 to vector<32x1xf32>
    %19 = arith.mulf %18, %17 : vector<32x1xf32>
    %20 = vector.broadcast %1 : f32 to vector<32x1xf32>
    %21 = arith.mulf %20, %8 : vector<32x1xf32>
    %22 = arith.divf %19, %21 : vector<32x1xf32>
    %cst_9 = arith.constant 0.000000e+00 : f32
    %23 = vector.broadcast %cst_9 : f32 to vector<32x128xf32>
    %24 = arith.maximumf %0, %23 : vector<32x128xf32>
    %25 = arith.mulf %24, %24 : vector<32x128xf32>
    %cst_10 = arith.constant dense<0.000000e+00> : vector<32xf32>
    %26 = vector.multi_reduction <add>, %25, %cst_10 [1] : vector<32x128xf32> to vector<32xf32>
    %27 = vector.shape_cast %26 : vector<32xf32> to vector<32x1xf32>
    %28 = math.sqrt %27 : vector<32x1xf32>
    %29 = arith.mulf %22, %28 : vector<32x1xf32>
    %cst_11 = arith.constant 1.000000e-15 : f32
    %30 = vector.broadcast %cst_11 : f32 to vector<32x1xf32>
    %31 = arith.maximumf %29, %30 : vector<32x1xf32>
    %32 = vector.broadcast %2 : f32 to vector<32x1xf32>
    %33 = arith.mulf %32, %31 : vector<32x1xf32>
    %34 = math.tanh %33 : vector<32x1xf32>
    %35 = vector.broadcast %2 : f32 to vector<32x1xf32>
    %36 = arith.mulf %35, %31 : vector<32x1xf32>
    %37 = arith.divf %34, %36 : vector<32x1xf32>
    %38 = vector.broadcast %2 : f32 to vector<32x1xf32>
    %39 = arith.divf %34, %38 : vector<32x1xf32>
    %cst_12 = arith.constant 0.995999991 : f32
    %40 = arith.divf %cst_12, %2 : f32
    %41 = vector.broadcast %40 : f32 to vector<32x1xf32>
    %42 = arith.cmpf ogt, %39, %41 : vector<32x1xf32>
    %43 = vector.broadcast %40 : f32 to vector<32x1xf32>
    %44 = arith.divf %43, %39 : vector<32x1xf32>
    %cst_13 = arith.constant 1.000000e+00 : f32
    %45 = vector.broadcast %cst_13 : f32 to vector<32x1xf32>
    %46 = arith.select %42, %44, %45 : vector<32x1xi1>, vector<32x1xf32>
    %47 = arith.mulf %22, %37 : vector<32x1xf32>
    %48 = arith.mulf %47, %46 : vector<32x1xf32>
    %49 = vector.broadcast %48 : vector<32x1xf32> to vector<32x128xf32>
    %50 = arith.mulf %24, %49 : vector<32x128xf32>
    %c0_14 = arith.constant 0 : index
    %c0_15 = arith.constant 0 : index
    %51 = vector.load %arg2[%c0_14, %c0_15] : memref<32x128xf32, #tpu.memory_space<vmem>>, vector<32x128xf32>
    tpu.vector_store %arg2[%c0_14, %c0_15], %50 {strides = array<i32>} : memref<32x128xf32, #tpu.memory_space<vmem>>, vector<32x128xf32>,
    return
  }
  func.func @transform_0(%arg0: i32) -> (i32, i32) {
    %c0_i32 = arith.constant 0 : i32
    %c0_i32_0 = arith.constant 0 : i32
    return %arg0, %c0_i32 : i32, i32
  }
  func.func @transform_1(%arg0: i32) -> (i32, i32) {
    %c0_i32 = arith.constant 0 : i32
    %c0_i32_0 = arith.constant 0 : i32
    return %arg0, %c0_i32 : i32, i32
  }
}

</mosaic_0001>

<llo_original>
// kernel: tpu_custom_call.1
$region0: #{tpu_custom_call.1}
  #allocation0 [shape = 'u32[]', space=smem, size = 0x4, offset = 0x4, fixed_abs, tag = 'smem constant byte address 0x4 - core index']
  #allocation1 [shape = 'u32[72,128]{1,0:T(1,128)}', space=vmem, size = 0x9000, scoped, tag = 'internal scratch']
  %s0 = inlined_call_operand.hbm [shape: f32[64,128], index: 0, kind: input, shape index: {}]
  %s1 = inlined_call_operand.hbm [shape: f32[64,128], index: 1, kind: output, shape index: {}]
  %s2 = sld [smem:[#allocation0]]
  $region41: #{tpu_custom_call.1} parent=0
    _
  %s4 = ssub.s32 1, %s2
  %s5 = scalar_select 0, %s4, %s2
  $region1: #{tpu_custom_call.1} parent=0
    #allocation2 [shape = 'u8[32768]{0}', space=vmem, size = 0x8000, scoped, tag = 'input window, operand 0']
    #allocation3 [shape = 's32[2]{0}', space=sflag, size = 0x8, scoped, tag = 'scoped memory for tpu_custom_call.1']
    #allocation4 [shape = 's32[2]{0}', space=sflag, size = 0x8, scoped, tag = 'scoped memory for tpu_custom_call.1']
    #allocation5 [shape = 'u8[32768]{0}', space=vmem, size = 0x8000, scoped, tag = 'output window, operand 0']
    %6 = vsyncpa [#allocation3], 0
    %s7 = scalar_lea.sflag [#allocation3], 1
    %8 = vsyncpa %s7, 0
    %9 = vsyncpa [#allocation4], 0
    %s10 = scalar_lea.sflag [#allocation4], 1
    %11 = vsyncpa %s10, 0
    loop: start=0, step=1, limit=4
    $region2: #{tpu_custom_call.1} parent=1 // loop_pre_header
      _
    $region3: #{tpu_custom_call.1} parent=1 // loop_header
      %s13 = sphi 0, %s17
      %p14 = scmp.ge.s32.totalorder %s13, 4
      %s23 = sphi 0, %s25
      %s26 = sphi 0, %s23
      %s27 = sphi 0, %s26
      %s43 = sphi 0, %s27
      %s49 = sphi 0, %s51
      %s52 = sphi 0, %s49
      %s53 = sphi 0, %s52
      %s69 = sphi 0, %s53
    $region4: #{tpu_custom_call.1} parent=1 // loop_header_branch
      %16 = sbr.rel (%p14) target = $region8
    $region5: #{tpu_custom_call.1} parent=1 // loop_body
      %s18 = ssub.s32 %s13, 1
      %s19 = ssub.s32 %s13, 2
      %s20 = sadd.s32 %s13, 1
      %s21 = ssub.s32 %s13, %s20
      %p22 = scmp.eq.s32.totalorder %s21, 0
      %s24 = sadd.s32 %s23, 1
      %s25 = scalar_select %p22, %s23, %s24
      %p28 = pneg %p22
      %p29 = scmp.eq.s32.totalorder %s13, 1
      %p30 = por %p28, %p29
      %p31 = scmp.ne.s32.totalorder %s23, %s26
      %p32 = scmp.eq.s32.totalorder %s13, 0
      %p33 = por %p31, %p32
      %p34 = scmp.ne.s32.totalorder %s23, %s26
      %p35 = scmp.eq.s32.totalorder %s18, 1
      %p36 = por %p34, %p35
      %p37 = scmp.ne.s32.totalorder %s26, %s27
      %p38 = scmp.eq.s32.totalorder %s18, 0
      %p39 = por %p37, %p38
      %p40 = scmp.ne.s32.totalorder %s26, %s27
      %p41 = scmp.eq.s32.totalorder %s19, 1
      %p42 = por %p40, %p41
      %p44 = scmp.ne.s32.totalorder %s27, %s43
      %p45 = scmp.eq.s32.totalorder %s19, 0
      %p46 = por %p44, %p45
      %s47 = ssub.s32 %s13, %s20
      %p48 = scmp.eq.s32.totalorder %s47, 0
      %s50 = sadd.s32 %s49, 1
      %s51 = scalar_select %p48, %s49, %s50
      %p54 = pneg %p48
      %p55 = scmp.eq.s32.totalorder %s13, 1
      %p56 = por %p54, %p55
      %p57 = scmp.ne.s32.totalorder %s49, %s52
      %p58 = scmp.eq.s32.totalorder %s13, 0
      %p59 = por %p57, %p58
      %p60 = scmp.ne.s32.totalorder %s49, %s52
      %p61 = scmp.eq.s32.totalorder %s18, 1
      %p62 = por %p60, %p61
      %p63 = scmp.ne.s32.totalorder %s52, %s53
      %p64 = scmp.eq.s32.totalorder %s18, 0
      %p65 = por %p63, %p64
      %p66 = scmp.ne.s32.totalorder %s52, %s53
      %p67 = scmp.eq.s32.totalorder %s19, 1
      %p68 = por %p66, %p67
      %p70 = scmp.ne.s32.totalorder %s53, %s69
      %p71 = scmp.eq.s32.totalorder %s19, 0
      %p72 = por %p70, %p71
      %p73 = scmp.le.s32.totalorder 1, %s13
      %p74 = scmp.lt.s32.totalorder %s13, 3
      %p75 = pnand %p73, %p74
      %p76 = pneg %p75
      // Predicated region
      $region9: #{tpu_custom_call.1} parent=5 // pred_check
        _
      $region10: #{tpu_custom_call.1} parent=5 // pred_check_branch
        %78 = sbr.rel (%p75) target = $region12
      $region11: #{tpu_custom_call.1} parent=5 // pred_region
        %s79 = ssub.s32 %s13, 1
      $region12: #{tpu_custom_call.1} parent=5 // pred_fallthru
        _
      %p80 = scmp.lt.s32.totalorder %s13, 2
      // Predicated region
      $region13: #{tpu_custom_call.1} parent=5 // pred_check
        %p81 = pneg %p80
      $region14: #{tpu_custom_call.1} parent=5 // pred_check_branch
        %83 = sbr.rel (%p81) target = $region16
      $region15: #{tpu_custom_call.1} parent=5 // pred_region
        // Predicated region
        $region17: #{tpu_custom_call.1} parent=15 // pred_check
          %p84 = pneg %p33
        $region18: #{tpu_custom_call.1} parent=15 // pred_check_branch
          %86 = sbr.rel (%p84) target = $region20
        $region19: #{tpu_custom_call.1} parent=15 // pred_region
          %s87 = sand.u32 %s23, 1
          %s88 = scalar_lea.sflag [#allocation3], %s87
          %s89 = sand.u32 %s23, 1
          %s90 = smul.addr %s89, 32
          %s91 = scalar_lea.vmem [#allocation2], %s90
          %s92 = smul.u32 4, %s13
          %94 = vsyncadd %s88, 0
          %s95 = smul.addr %s92, 8
          %s96 = scalar_lea.hbm %s0, %s95
          %s97 = sshll.u32 %s96, 4
          %s98 = int_to_ptr.hbm [resolvable:$true] %s97
          %s99 = sshll.u32 %s91, 4
          %s100 = int_to_ptr.vmem [resolvable:$true] %s99
          %105 = dma.hbm_to_vmem [thread:$0]  %s98, 512, %s100, %s88, 128, 128, 8
        $region20: #{tpu_custom_call.1} parent=15 // pred_fallthru
          _
      $region16: #{tpu_custom_call.1} parent=5 // pred_fallthru
        _
      %p106 = scmp.le.s32.totalorder 1, %s13
      %p107 = scmp.lt.s32.totalorder %s13, 3
      %p108 = pnand %p106, %p107
      %p109 = pneg %p108
      // Predicated region
      $region21: #{tpu_custom_call.1} parent=5 // pred_check
        _
      $region22: #{tpu_custom_call.1} parent=5 // pred_check_branch
        %111 = sbr.rel (%p108) target = $region24
      $region23: #{tpu_custom_call.1} parent=5 // pred_region
        %s112 = ssub.s32 %s13, 1
        %s113 = sand.u32 %s26, 1
        %s114 = scalar_lea.sflag [#allocation3], %s113
        %s115 = sand.u32 %s26, 1
        %s116 = smul.addr %s115, 32
        %s117 = scalar_lea.vmem [#allocation2], %s116
        // Predicated region
        $region25: #{tpu_custom_call.1} parent=23 // pred_check
          %p118 = pneg %p39
        $region26: #{tpu_custom_call.1} parent=23 // pred_check_branch
          %120 = sbr.rel (%p118) target = $region28
        $region27: #{tpu_custom_call.1} parent=23 // pred_region
          %122 = dma.done %s114, 512
        $region28: #{tpu_custom_call.1} parent=23 // pred_fallthru
          _
        %s123 = sand.u32 %s26, 1
        %s124 = scalar_lea.sflag [#allocation3], %s123
        %s125 = sand.u32 %s26, 1
        %s126 = smul.addr %s125, 32
        %s127 = scalar_lea.vmem [#allocation2], %s126
        %p128 = pneg %p39
        %p129 = pneg %p36
        %p130 = pneg %p65
        %p131 = pneg %p62
        %s132 = sand.u32 %s52, 1
        %s133 = scalar_lea.sflag [#allocation4], %s132
        %s134 = sand.u32 %s52, 1
        %s135 = smul.addr %s134, 32
        %s136 = scalar_lea.vmem [#allocation5], %s135
        %s137 = smul.u32 4, %s18
        %s138 = smul.u32 4, %s18
        %v139 = vld [vmem:[%s117] sm:$0xff]
        %v140 = vld [vmem:[%s117 + $0x8] sm:$0xff]
        %v141 = vld [vmem:[%s117 + $0x10] sm:$0xff]
        %v142 = vld [vmem:[%s117 + $0x18] sm:$0xff]
        %v143 = vmul.f32 %v139, %v139
        %v144 = vmul.f32 %v140, %v140
        %v145 = vmul.f32 %v141, %v141
        %v146 = vmul.f32 %v142, %v142
        %147 = vadd.xlane.f32.xlu0 %v143
        %v148 = vpop.xlane.xlu0 %147
        %149 = vadd.xlane.f32.xlu0 %v144
        %v150 = vpop.xlane.xlu0 %149
        %151 = vadd.xlane.f32.xlu0 %v145
        %v152 = vpop.xlane.xlu0 %151
        %153 = vadd.xlane.f32.xlu0 %v146
        %v154 = vpop.xlane.xlu0 %153
        %v155 = vrsqrt.pop %v148
        %v156 = vmul.f32 %v155, %v148
        %v157 = vmul.f32 %v156, %v155
        %v158 = vmul.f32 0.5, %v157
        %v159 = vsub.f32 1.5, %v158
        %v160 = vmul.f32 %v155, %v159
        %v161 = vmul.f32 %v148, %v160
        %vm162 = vcmp.eq.f32.partialorder %v148, inf
        %v163 = vsel %vm162, %v148, %v161
        %vm164 = vcmp.eq.f32.partialorder %v148, 0.0
        %v165 = vand.u32 %v148, 2147483648
        %v166 = vsel %vm164, %v165, %v163
        %v167 = vrsqrt.pop %v150
        %v168 = vmul.f32 %v167, %v150
        %v169 = vmul.f32 %v168, %v167
        %v170 = vmul.f32 0.5, %v169
        %v171 = vsub.f32 1.5, %v170
        %v172 = vmul.f32 %v167, %v171
        %v173 = vmul.f32 %v150, %v172
        %vm174 = vcmp.eq.f32.partialorder %v150, inf
        %v175 = vsel %vm174, %v150, %v173
        %vm176 = vcmp.eq.f32.partialorder %v150, 0.0
        %v177 = vand.u32 %v150, 2147483648
        %v178 = vsel %vm176, %v177, %v175
        %v179 = vrsqrt.pop %v152
        %v180 = vmul.f32 %v179, %v152
        %v181 = vmul.f32 %v180, %v179
        %v182 = vmul.f32 0.5, %v181
        %v183 = vsub.f32 1.5, %v182
        %v184 = vmul.f32 %v179, %v183
        %v185 = vmul.f32 %v152, %v184
        %vm186 = vcmp.eq.f32.partialorder %v152, inf
        %v187 = vsel %vm186, %v152, %v185
        %vm188 = vcmp.eq.f32.partialorder %v152, 0.0
        %v189 = vand.u32 %v152, 2147483648
        %v190 = vsel %vm188, %v189, %v187
        %v191 = vrsqrt.pop %v154
        %v192 = vmul.f32 %v191, %v154
        %v193 = vmul.f32 %v192, %v191
        %v194 = vmul.f32 0.5, %v193
        %v195 = vsub.f32 1.5, %v194
        %v196 = vmul.f32 %v191, %v195
        %v197 = vmul.f32 %v154, %v196
        %vm198 = vcmp.eq.f32.partialorder %v154, inf
        %v199 = vsel %vm198, %v154, %v197
        %vm200 = vcmp.eq.f32.partialorder %v154, 0.0
        %v201 = vand.u32 %v154, 2147483648
        %v202 = vsel %vm200, %v201, %v199
        %v203 = vmax.f32 %v166, 1e-15
        %v204 = vmax.f32 %v178, 1e-15
        %v205 = vmax.f32 %v190, 1e-15
        %v206 = vmax.f32 %v202, 1e-15
        %v207 = vmin.f32 %v203, 1.0
        %v208 = vmin.f32 %v204, 1.0
        %v209 = vmin.f32 %v205, 1.0
        %v210 = vmin.f32 %v206, 1.0
        %v211 = vadd.f32 %v207, 1.0
        %v212 = vlog2.pop %v211
        %v213 = vmul.f32 %v212, 0.6931472
        %v214 = vmul.f32 -0.5, %v207
        %v215 = vadd.f32 %v214, 1.0
        %v216 = vmul.f32 %v215, %v207
        %v217 = vand.u32 2147483647, %v207
        %vm218 = vcmp.lt.f32.partialorder %v217, 0.0004427343
        %v219 = vsel %vm218, %v216, %v213
        %v220 = vadd.f32 %v208, 1.0
        %v221 = vlog2.pop %v220
        %v222 = vmul.f32 %v221, 0.6931472
        %v223 = vmul.f32 -0.5, %v208
        %v224 = vadd.f32 %v223, 1.0
        %v225 = vmul.f32 %v224, %v208
        %v226 = vand.u32 2147483647, %v208
        %vm227 = vcmp.lt.f32.partialorder %v226, 0.0004427343
        %v228 = vsel %vm227, %v225, %v222
        %v229 = vadd.f32 %v209, 1.0
        %v230 = vlog2.pop %v229
        %v231 = vmul.f32 %v230, 0.6931472
        %v232 = vmul.f32 -0.5, %v209
        %v233 = vadd.f32 %v232, 1.0
        %v234 = vmul.f32 %v233, %v209
        %v235 = vand.u32 2147483647, %v209
        %vm236 = vcmp.lt.f32.partialorder %v235, 0.0004427343
        %v237 = vsel %vm236, %v234, %v231
        %v238 = vadd.f32 %v210, 1.0
        %v239 = vlog2.pop %v238
        %v240 = vmul.f32 %v239, 0.6931472
        %v241 = vmul.f32 -0.5, %v210
        %v242 = vadd.f32 %v241, 1.0
        %v243 = vmul.f32 %v242, %v210
        %v244 = vand.u32 2147483647, %v210
        %vm245 = vcmp.lt.f32.partialorder %v244, 0.0004427343
        %v246 = vsel %vm245, %v243, %v240
        %v247 = vsub.f32 0.0, %v207
        %v248 = vsub.f32 0.0, %v208
        %v249 = vsub.f32 0.0, %v209
        %v250 = vsub.f32 0.0, %v210
        %v251 = vadd.f32 %v247, 1.0
        %v252 = vlog2.pop %v251
        %v253 = vmul.f32 %v252, 0.6931472
        %v254 = vmul.f32 -0.5, %v247
        %v255 = vadd.f32 %v254, 1.0
        %v256 = vmul.f32 %v255, %v247
        %v257 = vand.u32 2147483647, %v247
        %vm258 = vcmp.lt.f32.partialorder %v257, 0.0004427343
        %v259 = vsel %vm258, %v256, %v253
        %v260 = vadd.f32 %v248, 1.0
        %v261 = vlog2.pop %v260
        %v262 = vmul.f32 %v261, 0.6931472
        %v263 = vmul.f32 -0.5, %v248
        %v264 = vadd.f32 %v263, 1.0
        %v265 = vmul.f32 %v264, %v248
        %v266 = vand.u32 2147483647, %v248
        %vm267 = vcmp.lt.f32.partialorder %v266, 0.0004427343
        %v268 = vsel %vm267, %v265, %v262
        %v269 = vadd.f32 %v249, 1.0
        %v270 = vlog2.pop %v269
        %v271 = vmul.f32 %v270, 0.6931472
        %v272 = vmul.f32 -0.5, %v249
        %v273 = vadd.f32 %v272, 1.0
        %v274 = vmul.f32 %v273, %v249
        %v275 = vand.u32 2147483647, %v249
        %vm276 = vcmp.lt.f32.partialorder %v275, 0.0004427343
        %v277 = vsel %vm276, %v274, %v271
        %v278 = vadd.f32 %v250, 1.0
        %v279 = vlog2.pop %v278
        %v280 = vmul.f32 %v279, 0.6931472
        %v281 = vmul.f32 -0.5, %v250
        %v282 = vadd.f32 %v281, 1.0
        %v283 = vmul.f32 %v282, %v250
        %v284 = vand.u32 2147483647, %v250
        %vm285 = vcmp.lt.f32.partialorder %v284, 0.0004427343
        %v286 = vsel %vm285, %v283, %v280
        %v287 = vsub.f32 %v219, %v259
        %v288 = vsub.f32 %v228, %v268
        %v289 = vsub.f32 %v237, %v277
        %v290 = vsub.f32 %v246, %v286
        %v291 = vmul.f32 %v287, 0.5
        %v292 = vmul.f32 %v288, 0.5
        %v293 = vmul.f32 %v289, 0.5
        %v294 = vmul.f32 %v290, 0.5
        %v295 = vrcp.pop %v203
        %v296 = vmul.f32 %v203, %v295
        %v297 = vsub.f32 1.0, %v296
        %v298 = vmul.f32 %v295, %v297
        %v299 = vadd.f32 %v295, %v298
        %vm300 = vweird.f32 %v203
        %vm301 = vweird.f32 %v295
        %vm302 = vmor %vm300, %vm301
        %v303 = vsel %vm302, %v295, %v299
        %v304 = vand.u32 2147483647, %v203
        %vm305 = vcmp.eq.f32.partialorder %v304, 8.507059e+37
        %v306 = vand.u32 %v203, 2147483648
        %v307 = vor.u32 1.1754944e-38, %v306
        %v308 = vsel %vm305, %v307, %v303
        %v309 = vmul.f32 %v291, %v308
        %v310 = vrcp.pop %v204
        %v311 = vmul.f32 %v204, %v310
        %v312 = vsub.f32 1.0, %v311
        %v313 = vmul.f32 %v310, %v312
        %v314 = vadd.f32 %v310, %v313
        %vm315 = vweird.f32 %v204
        %vm316 = vweird.f32 %v310
        %vm317 = vmor %vm315, %vm316
        %v318 = vsel %vm317, %v310, %v314
        %v319 = vand.u32 2147483647, %v204
        %vm320 = vcmp.eq.f32.partialorder %v319, 8.507059e+37
        %v321 = vand.u32 %v204, 2147483648
        %v322 = vor.u32 1.1754944e-38, %v321
        %v323 = vsel %vm320, %v322, %v318
        %v324 = vmul.f32 %v292, %v323
        %v325 = vrcp.pop %v205
        %v326 = vmul.f32 %v205, %v325
        %v327 = vsub.f32 1.0, %v326
        %v328 = vmul.f32 %v325, %v327
        %v329 = vadd.f32 %v325, %v328
        %vm330 = vweird.f32 %v205
        %vm331 = vweird.f32 %v325
        %vm332 = vmor %vm330, %vm331
        %v333 = vsel %vm332, %v325, %v329
        %v334 = vand.u32 2147483647, %v205
        %vm335 = vcmp.eq.f32.partialorder %v334, 8.507059e+37
        %v336 = vand.u32 %v205, 2147483648
        %v337 = vor.u32 1.1754944e-38, %v336
        %v338 = vsel %vm335, %v337, %v333
        %v339 = vmul.f32 %v293, %v338
        %v340 = vrcp.pop %v206
        %v341 = vmul.f32 %v206, %v340
        %v342 = vsub.f32 1.0, %v341
        %v343 = vmul.f32 %v340, %v342
        %v344 = vadd.f32 %v340, %v343
        %vm345 = vweird.f32 %v206
        %vm346 = vweird.f32 %v340
        %vm347 = vmor %vm345, %vm346
        %v348 = vsel %vm347, %v340, %v344
        %v349 = vand.u32 2147483647, %v206
        %vm350 = vcmp.eq.f32.partialorder %v349, 8.507059e+37
        %v351 = vand.u32 %v206, 2147483648
        %v352 = vor.u32 1.1754944e-38, %v351
        %v353 = vsel %vm350, %v352, %v348
        %v354 = vmul.f32 %v294, %v353
        %v355 = vmax.f32 %v139, 0.0
        %v356 = vmax.f32 %v140, 0.0
        %v357 = vmax.f32 %v141, 0.0
        %v358 = vmax.f32 %v142, 0.0
        %v359 = vmul.f32 %v355, %v355
        %v360 = vmul.f32 %v356, %v356
        %v361 = vmul.f32 %v357, %v357
        %v362 = vmul.f32 %v358, %v358
        %363 = vadd.xlane.f32.xlu0 %v359
        %v364 = vpop.xlane.xlu0 %363
        %365 = vadd.xlane.f32.xlu0 %v360
        %v366 = vpop.xlane.xlu0 %365
        %367 = vadd.xlane.f32.xlu0 %v361
        %v368 = vpop.xlane.xlu0 %367
        %369 = vadd.xlane.f32.xlu0 %v362
        %v370 = vpop.xlane.xlu0 %369
        %v371 = vrsqrt.pop %v364
        %v372 = vmul.f32 %v371, %v364
        %v373 = vmul.f32 %v372, %v371
        %v374 = vmul.f32 0.5, %v373
        %v375 = vsub.f32 1.5, %v374
        %v376 = vmul.f32 %v371, %v375
        %v377 = vmul.f32 %v364, %v376
        %vm378 = vcmp.eq.f32.partialorder %v364, inf
        %v379 = vsel %vm378, %v364, %v377
        %vm380 = vcmp.eq.f32.partialorder %v364, 0.0
        %v381 = vand.u32 %v364, 2147483648
        %v382 = vsel %vm380, %v381, %v379
        %v383 = vrsqrt.pop %v366
        %v384 = vmul.f32 %v383, %v366
        %v385 = vmul.f32 %v384, %v383
        %v386 = vmul.f32 0.5, %v385
        %v387 = vsub.f32 1.5, %v386
        %v388 = vmul.f32 %v383, %v387
        %v389 = vmul.f32 %v366, %v388
        %vm390 = vcmp.eq.f32.partialorder %v366, inf
        %v391 = vsel %vm390, %v366, %v389
        %vm392 = vcmp.eq.f32.partialorder %v366, 0.0
        %v393 = vand.u32 %v366, 2147483648
        %v394 = vsel %vm392, %v393, %v391
        %v395 = vrsqrt.pop %v368
        %v396 = vmul.f32 %v395, %v368
        %v397 = vmul.f32 %v396, %v395
        %v398 = vmul.f32 0.5, %v397
        %v399 = vsub.f32 1.5, %v398
        %v400 = vmul.f32 %v395, %v399
        %v401 = vmul.f32 %v368, %v400
        %vm402 = vcmp.eq.f32.partialorder %v368, inf
        %v403 = vsel %vm402, %v368, %v401
        %vm404 = vcmp.eq.f32.partialorder %v368, 0.0
        %v405 = vand.u32 %v368, 2147483648
        %v406 = vsel %vm404, %v405, %v403
        %v407 = vrsqrt.pop %v370
        %v408 = vmul.f32 %v407, %v370
        %v409 = vmul.f32 %v408, %v407
        %v410 = vmul.f32 0.5, %v409
        %v411 = vsub.f32 1.5, %v410
        %v412 = vmul.f32 %v407, %v411
        %v413 = vmul.f32 %v370, %v412
        %vm414 = vcmp.eq.f32.partialorder %v370, inf
        %v415 = vsel %vm414, %v370, %v413
        %vm416 = vcmp.eq.f32.partialorder %v370, 0.0
        %v417 = vand.u32 %v370, 2147483648
        %v418 = vsel %vm416, %v417, %v415
        %v419 = vmul.f32 %v309, %v382
        %v420 = vmul.f32 %v324, %v394
        %v421 = vmul.f32 %v339, %v406
        %v422 = vmul.f32 %v354, %v418
        %v423 = vmax.f32 %v419, 1e-15
        %v424 = vmax.f32 %v420, 1e-15
        %v425 = vmax.f32 %v421, 1e-15
        %v426 = vmax.f32 %v422, 1e-15
        %v427 = vmul.f32 %v423, 0.70710677
        %v428 = vmul.f32 %v424, 0.70710677
        %v429 = vmul.f32 %v425, 0.70710677
        %v430 = vmul.f32 %v426, 0.70710677
        %v431 = vtanh.pop %v427
        %v432 = vtanh.pop %v428
        %v433 = vtanh.pop %v429
        %v434 = vtanh.pop %v430
        %v435 = vrcp.pop %v427
        %v436 = vmul.f32 %v427, %v435
        %v437 = vsub.f32 1.0, %v436
        %v438 = vmul.f32 %v435, %v437
        %v439 = vadd.f32 %v435, %v438
        %vm440 = vweird.f32 %v427
        %vm441 = vweird.f32 %v435
        %vm442 = vmor %vm440, %vm441
        %v443 = vsel %vm442, %v435, %v439
        %v444 = vand.u32 2147483647, %v427
        %vm445 = vcmp.eq.f32.partialorder %v444, 8.507059e+37
        %v446 = vand.u32 %v427, 2147483648
        %v447 = vor.u32 1.1754944e-38, %v446
        %v448 = vsel %vm445, %v447, %v443
        %v449 = vmul.f32 %v431, %v448
        %v450 = vrcp.pop %v428
        %v451 = vmul.f32 %v428, %v450
        %v452 = vsub.f32 1.0, %v451
        %v453 = vmul.f32 %v450, %v452
        %v454 = vadd.f32 %v450, %v453
        %vm455 = vweird.f32 %v428
        %vm456 = vweird.f32 %v450
        %vm457 = vmor %vm455, %vm456
        %v458 = vsel %vm457, %v450, %v454
        %v459 = vand.u32 2147483647, %v428
        %vm460 = vcmp.eq.f32.partialorder %v459, 8.507059e+37
        %v461 = vand.u32 %v428, 2147483648
        %v462 = vor.u32 1.1754944e-38, %v461
        %v463 = vsel %vm460, %v462, %v458
        %v464 = vmul.f32 %v432, %v463
        %v465 = vrcp.pop %v429
        %v466 = vmul.f32 %v429, %v465
        %v467 = vsub.f32 1.0, %v466
        %v468 = vmul.f32 %v465, %v467
        %v469 = vadd.f32 %v465, %v468
        %vm470 = vweird.f32 %v429
        %vm471 = vweird.f32 %v465
        %vm472 = vmor %vm470, %vm471
        %v473 = vsel %vm472, %v465, %v469
        %v474 = vand.u32 2147483647, %v429
        %vm475 = vcmp.eq.f32.partialorder %v474, 8.507059e+37
        %v476 = vand.u32 %v429, 2147483648
        %v477 = vor.u32 1.1754944e-38, %v476
        %v478 = vsel %vm475, %v477, %v473
        %v479 = vmul.f32 %v433, %v478
        %v480 = vrcp.pop %v430
        %v481 = vmul.f32 %v430, %v480
        %v482 = vsub.f32 1.0, %v481
        %v483 = vmul.f32 %v480, %v482
        %v484 = vadd.f32 %v480, %v483
        %vm485 = vweird.f32 %v430
        %vm486 = vweird.f32 %v480
        %vm487 = vmor %vm485, %vm486
        %v488 = vsel %vm487, %v480, %v484
        %v489 = vand.u32 2147483647, %v430
        %vm490 = vcmp.eq.f32.partialorder %v489, 8.507059e+37
        %v491 = vand.u32 %v430, 2147483648
        %v492 = vor.u32 1.1754944e-38, %v491
        %v493 = vsel %vm490, %v492, %v488
        %v494 = vmul.f32 %v434, %v493
        %v495 = vrcp.pop 0.70710677
        %v496 = vmul.f32 0.70710677, %v495
        %v497 = vsub.f32 1.0, %v496
        %v498 = vmul.f32 %v495, %v497
        %v499 = vadd.f32 %v495, %v498
        %vm500 = vweird.f32 %v495
        %v501 = vsel %vm500, %v495, %v499
        %v502 = vmul.f32 %v431, %v501
        %v503 = vmul.f32 %v432, %v501
        %v504 = vmul.f32 %v433, %v501
        %v505 = vmul.f32 %v434, %v501
        %vm506 = vcmp.gt.f32.partialorder %v502, 1.4085567
        %vm507 = vcmp.gt.f32.partialorder %v503, 1.4085567
        %vm508 = vcmp.gt.f32.partialorder %v504, 1.4085567
        %vm509 = vcmp.gt.f32.partialorder %v505, 1.4085567
        %v510 = vrcp.pop %v502
        %v511 = vmul.f32 %v502, %v510
        %v512 = vsub.f32 1.0, %v511
        %v513 = vmul.f32 %v510, %v512
        %v514 = vadd.f32 %v510, %v513
        %vm515 = vweird.f32 %v502
        %vm516 = vweird.f32 %v510
        %vm517 = vmor %vm515, %vm516
        %v518 = vsel %vm517, %v510, %v514
        %v519 = vand.u32 2147483647, %v502
        %vm520 = vcmp.eq.f32.partialorder %v519, 8.507059e+37
        %v521 = vand.u32 %v502, 2147483648
        %v522 = vor.u32 1.1754944e-38, %v521
        %v523 = vsel %vm520, %v522, %v518
        %v524 = vmul.f32 1.4085567, %v523
        %v525 = vrcp.pop %v503
        %v526 = vmul.f32 %v503, %v525
        %v527 = vsub.f32 1.0, %v526
        %v528 = vmul.f32 %v525, %v527
        %v529 = vadd.f32 %v525, %v528
        %vm530 = vweird.f32 %v503
        %vm531 = vweird.f32 %v525
        %vm532 = vmor %vm530, %vm531
        %v533 = vsel %vm532, %v525, %v529
        %v534 = vand.u32 2147483647, %v503
        %vm535 = vcmp.eq.f32.partialorder %v534, 8.507059e+37
        %v536 = vand.u32 %v503, 2147483648
        %v537 = vor.u32 1.1754944e-38, %v536
        %v538 = vsel %vm535, %v537, %v533
        %v539 = vmul.f32 1.4085567, %v538
        %v540 = vrcp.pop %v504
        %v541 = vmul.f32 %v504, %v540
        %v542 = vsub.f32 1.0, %v541
        %v543 = vmul.f32 %v540, %v542
        %v544 = vadd.f32 %v540, %v543
        %vm545 = vweird.f32 %v504
        %vm546 = vweird.f32 %v540
        %vm547 = vmor %vm545, %vm546
        %v548 = vsel %vm547, %v540, %v544
        %v549 = vand.u32 2147483647, %v504
        %vm550 = vcmp.eq.f32.partialorder %v549, 8.507059e+37
        %v551 = vand.u32 %v504, 2147483648
        %v552 = vor.u32 1.1754944e-38, %v551
        %v553 = vsel %vm550, %v552, %v548
        %v554 = vmul.f32 1.4085567, %v553
        %v555 = vrcp.pop %v505
        %v556 = vmul.f32 %v505, %v555
        %v557 = vsub.f32 1.0, %v556
        %v558 = vmul.f32 %v555, %v557
        %v559 = vadd.f32 %v555, %v558
        %vm560 = vweird.f32 %v505
        %vm561 = vweird.f32 %v555
        %vm562 = vmor %vm560, %vm561
        %v563 = vsel %vm562, %v555, %v559
        %v564 = vand.u32 2147483647, %v505
        %vm565 = vcmp.eq.f32.partialorder %v564, 8.507059e+37
        %v566 = vand.u32 %v505, 2147483648
        %v567 = vor.u32 1.1754944e-38, %v566
        %v568 = vsel %vm565, %v567, %v563
        %v569 = vmul.f32 1.4085567, %v568
        %v570 = vsel %vm506, %v524, 1.0
        %v571 = vsel %vm507, %v539, 1.0
        %v572 = vsel %vm508, %v554, 1.0
        %v573 = vsel %vm509, %v569, 1.0
        %v574 = vmul.f32 %v309, %v449
        %v575 = vmul.f32 %v324, %v464
        %v576 = vmul.f32 %v339, %v479
        %v577 = vmul.f32 %v354, %v494
        %v578 = vmul.f32 %v574, %v570
        %v579 = vmul.f32 %v575, %v571
        %v580 = vmul.f32 %v576, %v572
        %v581 = vmul.f32 %v577, %v573
        %v582 = vmul.f32 %v355, %v578
        %v583 = vmul.f32 %v356, %v579
        %v584 = vmul.f32 %v357, %v580
        %v585 = vmul.f32 %v358, %v581
        %586 = vst [vmem:[%s136] sm:$0xff] %v582
        %587 = vst [vmem:[%s136 + $0x8] sm:$0xff] %v583
        %588 = vst [vmem:[%s136 + $0x10] sm:$0xff] %v584
        %589 = vst [vmem:[%s136 + $0x18] sm:$0xff] %v585
        %s590 = sand.u32 %s52, 1
        %s591 = scalar_lea.sflag [#allocation4], %s590
        %s592 = sand.u32 %s52, 1
        %s593 = smul.addr %s592, 32
        %s594 = scalar_lea.vmem [#allocation5], %s593
        // Predicated region
        $region29: #{tpu_custom_call.1} parent=23 // pred_check
          %p595 = pneg %p62
        $region30: #{tpu_custom_call.1} parent=23 // pred_check_branch
          %597 = sbr.rel (%p595) target = $region32
        $region31: #{tpu_custom_call.1} parent=23 // pred_region
          %s598 = smul.u32 4, %s18
          %600 = vsyncadd %s591, 0
          %s601 = smul.addr %s598, 8
          %s602 = scalar_lea.hbm %s1, %s601
          %s603 = sshll.u32 %s594, 4
          %s604 = int_to_ptr.vmem [resolvable:$true] %s603
          %s605 = sshll.u32 %s602, 4
          %s606 = int_to_ptr.hbm [resolvable:$true] %s605
          %611 = dma.vmem_to_hbm [thread:$0]  %s604, 512, %s606, %s591, 128, 128, 8
        $region32: #{tpu_custom_call.1} parent=23 // pred_fallthru
          _
      $region24: #{tpu_custom_call.1} parent=5 // pred_fallthru
        _
      %p612 = scmp.le.s32.totalorder 2, %s13
      // Predicated region
      $region33: #{tpu_custom_call.1} parent=5 // pred_check
        %p613 = pneg %p612
      $region34: #{tpu_custom_call.1} parent=5 // pred_check_branch
        %615 = sbr.rel (%p613) target = $region36
      $region35: #{tpu_custom_call.1} parent=5 // pred_region
        %s616 = ssub.s32 %s13, 2
        // Predicated region
        $region37: #{tpu_custom_call.1} parent=35 // pred_check
          %p617 = pneg %p68
        $region38: #{tpu_custom_call.1} parent=35 // pred_check_branch
          %619 = sbr.rel (%p617) target = $region40
        $region39: #{tpu_custom_call.1} parent=35 // pred_region
          %s620 = sand.u32 %s53, 1
          %s621 = scalar_lea.sflag [#allocation4], %s620
          %s622 = sand.u32 %s53, 1
          %s623 = smul.addr %s622, 32
          %s624 = scalar_lea.vmem [#allocation5], %s623
          %626 = dma.done %s621, 512
        $region40: #{tpu_custom_call.1} parent=35 // pred_fallthru
          _
      $region36: #{tpu_custom_call.1} parent=5 // pred_fallthru
        _
    $region6: #{tpu_custom_call.1} parent=1 // loop_footer
      %s17 = sadd.s32 1, %s13
    $region7: #{tpu_custom_call.1} parent=1 // loop_footer_branch
      %12 = sbr.rel target = $region3
    $region8: #{tpu_custom_call.1} parent=1 // loop_exit
      _
    %627 = vsyncpa [#allocation3], 1
    %s628 = scalar_lea.sflag [#allocation3], 1
    %629 = vsyncpa %s628, 1
    %630 = vsyncpa [#allocation4], 1
    %s631 = scalar_lea.sflag [#allocation4], 1
    %632 = vsyncpa %s631, 1

</llo_original>
